<compile_context>
chip_gen: v7x
topology: tpu7x:2x2x1
jax: 0.10.0
libtpu: 0.0.40
codegen_flags: <defaults>
</compile_context>

<pallas_src>
import functools

import jax
import jax.numpy as jnp
from jax.experimental import pallas as pl
from jax.experimental.pallas import tpu as pltpu

_LN_EPS = 1e-5


def _round_up(x, m):
    return ((x + m - 1) // m) * m


def _sublane_multiple(dtype):
    # f32 -> 8, bf16 -> 16, int8/fp8 -> 32 (sub-32-bit dtypes pack along sublanes)
    return max(8, 32 // jnp.dtype(dtype).itemsize)


def _pick_tile(n, target, mult):
    """Largest tile <= target that divides n (multiple of `mult` when possible)."""
    if n <= target:
        return n
    t = (target // mult) * mult
    while t >= mult:
        if n % t == 0:
            return t
        t -= mult
    # TODO(synk): pad the sequence dim + add kv masking for awkward lengths
    # (a single full-length tile can blow v7x's 64 MiB VMEM and kills pipelining).
    return n


def _vmem_limit_bytes():
    """Generation-aware VMEM budget: ~75% of physical (96 MiB-class on v5e/v6e, 48 MiB on v7x)."""
    try:
        cap = int(pltpu.get_tpu_info().vmem_capacity_bytes)
    except Exception:
        cap = 64 * 1024 * 1024  # conservative fallback (v7x-sized)
    return (cap * 3) // 4


# --------------------------- kernel 1: LayerNorm + per-head QKV projection ---------------------------
def _ln_qkv_kernel(x_ref, g_ref, b_ref, wq_ref, wk_ref, wv_ref,
                   q_ref, k_ref, v_ref, xn_ref, *, d_true, scale):
    h = pl.program_id(2)

    # LayerNorm is computed once per (batch, seq-tile) and cached; heads reuse it.
    @pl.when(h == 0)
    def _ln():
        x32 = x_ref[0].astype(jnp.float32)                  # (TS, D_pad); padded cols are zero
        inv_d = 1.0 / d_true
        s1 = jnp.sum(x32, axis=-1, keepdims=True)
        s2 = jnp.sum(x32 * x32, axis=-1, keepdims=True)
        mean = s1 * inv_d
        var = jnp.maximum(s2 * inv_d - mean * mean, 0.0)     # biased var, clamped >= 0
        rstd = jax.lax.rsqrt(var + _LN_EPS)
        g = g_ref[0].astype(jnp.float32)                     # zero on padded cols
        b = b_ref[0].astype(jnp.float32)
        xn_ref[...] = ((x32 - mean) * rstd * g + b).astype(xn_ref.dtype)

    xn = xn_ref[...]                                         # (TS, D_pad), compute dtype
    q = jnp.dot(xn, wq_ref[0], preferred_element_type=jnp.float32)   # (TS, dh)
    k = jnp.dot(xn, wk_ref[0], preferred_element_type=jnp.float32)
    v = jnp.dot(xn, wv_ref[0], preferred_element_type=jnp.float32)

    q_ref[0, 0] = (q * scale).astype(q_ref.dtype)            # scale hoisted: applied once
    k_ref[0, 0] = k.astype(k_ref.dtype)
    v_ref[0, 0] = v.astype(v_ref.dtype)


# --------------------------- kernel 2: flash attention ---------------------------
def _flash_attn_kernel(q_ref, k_ref, v_ref, o_ref, m_ref, l_ref, acc_ref):
    ki = pl.program_id(3)

    @pl.when(ki == 0)
    def _init():
        m_ref[...] = jnp.full(m_ref.shape, -jnp.inf, jnp.float32)
        l_ref[...] = jnp.zeros(l_ref.shape, jnp.float32)
        acc_ref[...] = jnp.zeros(acc_ref.shape, jnp.float32)

    q = q_ref[0, 0]                                          # (TQ, dh), already scaled
    k = k_ref[0, 0]                                          # (TK, dh)
    v = v_ref[0, 0]                                          # (TK, dh)

    sim = jax.lax.dot_general(q, k, (((1,), (1,)), ((), ())),
                              preferred_element_type=jnp.float32)    # (TQ, TK)

    m_prev = m_ref[...]
    m_new = jnp.maximum(m_prev, jnp.max(sim, axis=-1, keepdims=True))
    p = jnp.exp(sim - m_new)
    alpha = jnp.exp(m_prev - m_new)

    l_ref[...] = alpha * l_ref[...] + jnp.sum(p, axis=-1, keepdims=True)
    acc_ref[...] = alpha * acc_ref[...] + jnp.dot(
        p.astype(v.dtype), v, preferred_element_type=jnp.float32)
    m_ref[...] = m_new

    # TODO(synk): pad_mask / attn_mask are None in this forward; masking not implemented.
    @pl.when(ki == pl.num_programs(3) - 1)
    def _finalize():
        inv_l = pl.reciprocal(l_ref[...], approx=True)
        o_ref[0, 0] = (acc_ref[...] * inv_l).astype(o_ref.dtype)


# --------------------------- kernel 3: output projection (reduce over heads) ---------------------------
def _out_proj_kernel(a_ref, w_ref, y_ref, acc_ref):
    h = pl.program_id(2)

    @pl.when(h == 0)
    def _init():
        acc_ref[...] = jnp.zeros(acc_ref.shape, jnp.float32)

    acc_ref[...] += jnp.dot(a_ref[0, 0], w_ref[0], preferred_element_type=jnp.float32)

    @pl.when(h == pl.num_programs(2) - 1)
    def _finalize():
        y_ref[0] = acc_ref[...].astype(y_ref.dtype)


# --------------------------- parameter preprocessing (hoisted: call once, reuse) ---------------------------
def prepare_attention_params(gamma, beta, wq, wkv, wout, *, heads, dim_head, d_model,
                             dtype=jnp.float32):
    """Pad/transpose weights into head-major kernel layouts. On v5e use dtype=jnp.bfloat16
    (f32 MXU matmuls are several passes there); keep f32 elsewhere unless bandwidth-bound."""
    inner = heads * dim_head
    assert wq.shape == (inner, d_model)
    assert wkv.shape == (2 * inner, d_model)
    assert wout.shape == (d_model, inner)

    d_pad = _round_up(d_model, 128)          # lane-dense model dim; padding cols are zero

    gp = jnp.pad(gamma, (0, d_pad - d_model)).reshape(1, d_pad).astype(dtype)
    bp = jnp.pad(beta, (0, d_pad - d_model)).reshape(1, d_pad).astype(dtype)

    def head_major_in(w):                    # (heads*dh, D) -> (heads, D_pad, dh)
        w3 = w.reshape(heads, dim_head, d_model)
        w3 = jnp.pad(w3, ((0, 0), (0, 0), (0, d_pad - d_model)))
        return w3.transpose(0, 2, 1).astype(dtype)

    wq_t = head_major_in(wq)
    wk_t = head_major_in(wkv[:inner])
    wv_t = head_major_in(wkv[inner:])

    # wout: (D, heads*dh) -> (heads, dh, D_pad)
    wo3 = jnp.pad(wout.reshape(d_model, heads, dim_head), ((0, d_pad - d_model), (0, 0), (0, 0)))
    wout_t = wo3.transpose(1, 2, 0).astype(dtype)

    return dict(gamma=gp, beta=bp, wq=wq_t, wk=wk_t, wv=wv_t, wout=wout_t)


# --------------------------- forward ---------------------------
def attention_apply(params, x, *, heads, dim_head,
                    q_tile=512, kv_tile=512, proj_tile=512):
    B, N, D = x.shape
    d_pad = params["wq"].shape[1]
    dh = dim_head
    cd = params["wq"].dtype                   # matmul / storage dtype for q,k,v,attn_out
    scale = dim_head ** -0.5
    vmem_limit = _vmem_limit_bytes()

    sub = _sublane_multiple(cd)
    ts = _pick_tile(N, proj_tile, sub)
    tq = _pick_tile(N, q_tile, sub)
    tk = _pick_tile(N, kv_tile, sub)
    # v7x has 2 TensorCores: give the projection grids >= 2 parallel (batch*seq-tile) steps.
    if B * (N // ts) < 2:
        half = ts // 2
        if half >= sub and half % sub == 0 and N % half == 0:
            ts = half
    n_s, n_q, n_k = N // ts, N // tq, N // tk

    xp = jnp.pad(x, ((0, 0), (0, 0), (0, d_pad - D)))

    # ---- kernel 1: LayerNorm + per-head QKV projection -> (B, H, N, dh) ----
    qkv_shape = jax.ShapeDtypeStruct((B, heads, N, dh), cd)
    q, k, v = pl.pallas_call(
        functools.partial(_ln_qkv_kernel, d_true=float(D), scale=scale),
        out_shape=(qkv_shape, qkv_shape, qkv_shape),
        grid=(B, n_s, heads),
        in_specs=[
            pl.BlockSpec((1, ts, d_pad), lambda b, s, h: (b, s, 0)),      # x (fetched once per (b,s))
            pl.BlockSpec((1, d_pad), lambda b, s, h: (0, 0)),             # gamma
            pl.BlockSpec((1, d_pad), lambda b, s, h: (0, 0)),             # beta
            pl.BlockSpec((1, d_pad, dh), lambda b, s, h: (h, 0, 0)),      # wq  (streams per head)
            pl.BlockSpec((1, d_pad, dh), lambda b, s, h: (h, 0, 0)),      # wk
            pl.BlockSpec((1, d_pad, dh), lambda b, s, h: (h, 0, 0)),      # wv
        ],
        out_specs=(
            pl.BlockSpec((1, 1, ts, dh), lambda b, s, h: (b, h, s, 0)),
            pl.BlockSpec((1, 1, ts, dh), lambda b, s, h: (b, h, s, 0)),
            pl.BlockSpec((1, 1, ts, dh), lambda b, s, h: (b, h, s, 0)),
        ),
        scratch_shapes=[pltpu.VMEM((ts, d_pad), cd)],                     # cached LayerNorm output
        compiler_params=pltpu.CompilerParams(
            dimension_semantics=("parallel", "parallel", "arbitrary"),
            vmem_limit_bytes=vmem_limit),
    )(xp, params["gamma"], params["beta"], params["wq"], params["wk"], params["wv"])

    # ---- kernel 2: flash attention over (batch, heads, q-tiles, kv-tiles) ----
    itemsize = jnp.dtype(cd).itemsize
    cost = pl.CostEstimate(
        flops=int(4 * B * heads * N * N * dh),                         # QK^T + PV
        transcendentals=int(B * heads * N * N),                        # exp
        bytes_accessed=int(itemsize * (B * heads * N * dh * (1 + 2 * n_q)   # q + n_q-fold K/V re-reads
                                       + B * heads * N * dh)),              # output write
    )
    attn_out = pl.pallas_call(
        _flash_attn_kernel,
        out_shape=jax.ShapeDtypeStruct((B, heads, N, dh), cd),
        grid=(B, heads, n_q, n_k),
        in_specs=[
            pl.BlockSpec((1, 1, tq, dh), lambda b, h, qi, ki: (b, h, qi, 0)),
            pl.BlockSpec((1, 1, tk, dh), lambda b, h, qi, ki: (b, h, ki, 0)),
            pl.BlockSpec((1, 1, tk, dh), lambda b, h, qi, ki: (b, h, ki, 0)),
        ],
        out_specs=pl.BlockSpec((1, 1, tq, dh), lambda b, h, qi, ki: (b, h, qi, 0)),
        scratch_shapes=[
            pltpu.VMEM((tq, 1), jnp.float32),       # running max m
            pltpu.VMEM((tq, 1), jnp.float32),       # running denom l
            pltpu.VMEM((tq, dh), jnp.float32),      # output accumulator
        ],
        compiler_params=pltpu.CompilerParams(
            dimension_semantics=("parallel", "parallel", "parallel", "arbitrary"),
            vmem_limit_bytes=vmem_limit),
        cost_estimate=cost,
    )(q, k, v)

    # ---- kernel 3: output projection, accumulated over heads ----
    y = pl.pallas_call(
        _out_proj_kernel,
        out_shape=jax.ShapeDtypeStruct((B, N, d_pad), x.dtype),
        grid=(B, n_s, heads),
        in_specs=[
            pl.BlockSpec((1, 1, ts, dh), lambda b, s, h: (b, h, s, 0)),   # attn_out, head-major
            pl.BlockSpec((1, dh, d_pad), lambda b, s, h: (h, 0, 0)),      # wout (streams per head)
        ],
        out_specs=pl.BlockSpec((1, ts, d_pad), lambda b, s, h: (b, s, 0)),
        scratch_shapes=[pltpu.VMEM((ts, d_pad), jnp.float32)],
        compiler_params=pltpu.CompilerParams(
            dimension_semantics=("parallel", "parallel", "arbitrary"),
            vmem_limit_bytes=vmem_limit),
    )(attn_out, params["wout"])

    return y[..., :D]


def attention_forward(x, gamma, beta, wq, wkv, wout, *, heads, dim_head,
                      q_tile=512, kv_tile=512, proj_tile=512, compute_dtype=None):
    """Convenience wrapper (prepares params on every call). For repeated use, call
    prepare_attention_params once and reuse the result with attention_apply."""
    cd = compute_dtype if compute_dtype is not None else x.dtype
    params = prepare_attention_params(gamma, beta, wq, wkv, wout, heads=heads,
                                      dim_head=dim_head, d_model=x.shape[-1], dtype=cd)
    return attention_apply(params, x, heads=heads, dim_head=dim_head,
                           q_tile=q_tile, kv_tile=kv_tile, proj_tile=proj_tile)


# --------------------------- pure-JAX reference (mirrors the PyTorch forward) ---------------------------
def _reference(x, gamma, beta, wq, wkv, wout, *, heads, dim_head):
    x = x.astype(jnp.float32)
    mean = jnp.mean(x, axis=-1, keepdims=True)
    var = jnp.mean((x - mean) ** 2, axis=-1, keepdims=True)
    xn = (x - mean) / jnp.sqrt(var + _LN_EPS) * gamma + beta
    inner = heads * dim_head
    q = xn @ wq.T
    kv = xn @ wkv.T
    k, v = kv[..., :inner], kv[..., inner:]

    def split_heads(t):
        b, n, _ = t.shape
        return t.reshape(b, n, heads, dim_head).transpose(0, 2, 1, 3)

    q, k, v = map(split_heads, (q, k, v))
    q = q * (dim_head ** -0.5)
    sim = jnp.einsum('bhid,bhjd->bhij', q, k)
    attn = jax.nn.softmax(sim, axis=-1)
    out = jnp.einsum('bhij,bhjd->bhid', attn, v)
    b, h, n, d = out.shape
    out = out.transpose(0, 2, 1, 3).reshape(b, n, h * d)
    return out @ wout.T


if __name__ == "__main__":
    def run_case(B, N, D, heads, dim_head, **tiles):
        inner = heads * dim_head
        key = jax.random.PRNGKey(0)
        kx, kg, kq, kkv, ko = jax.random.split(key, 5)

        x = jax.random.normal(kx, (B, N, D), dtype=jnp.float32)
        gamma = 1.0 + 0.1 * jax.random.normal(kg, (D,), dtype=jnp.float32)
        beta = jnp.zeros((D,), dtype=jnp.float32)        # module buffer is fixed zeros
        wq = 0.05 * jax.random.normal(kq, (inner, D), dtype=jnp.float32)
        wkv = 0.05 * jax.random.normal(kkv, (2 * inner, D), dtype=jnp.float32)
        wout = 0.05 * jax.random.normal(ko, (D, inner), dtype=jnp.float32)

        # prepare weights once (hoisted preprocessing), then apply
        params = prepare_attention_params(gamma, beta, wq, wkv, wout, heads=heads,
                                          dim_head=dim_head, d_model=D, dtype=x.dtype)
        out = attention_apply(params, x, heads=heads, dim_head=dim_head, **tiles)
        out = jax.block_until_ready(out)
        ref = _reference(x, gamma, beta, wq, wkv, wout, heads=heads, dim_head=dim_head)
        assert out.shape == (B, N, D)
        assert jnp.allclose(out, ref, atol=2e-3, rtol=2e-3), \
            f"mismatch (heads={heads}, dim_head={dim_head})"

    run_case(B=2, N=8, D=32, heads=1, dim_head=64)                       # module defaults
    run_case(B=2, N=8, D=32, heads=2, dim_head=32)                       # multi-head path
    run_case(B=1, N=16, D=32, heads=2, dim_head=32,                      # multi-tile flash loop,
             q_tile=8, kv_tile=8, proj_tile=8)                           # head reduction, B=1 split
    print("KERNEL_OK")
</pallas_src>

<mosaic_0001>
module attributes {stable_mosaic.version = 11 : i64} {
  func.func @_ln_qkv_kernel(%arg0: i32, %arg1: i32, %arg2: i32, %arg3: memref<1x8x128xf32, #tpu.memory_space<vmem>>, %arg4: memref<1x128xf32, #tpu.memory_space<vmem>>, %arg5: memref<1x128xf32, #tpu.memory_space<vmem>>, %arg6: memref<1x128x64xf32, #tpu.memory_space<vmem>>, %arg7: memref<1x128x64xf32, #tpu.memory_space<vmem>>, %arg8: memref<1x128x64xf32, #tpu.memory_space<vmem>>, %arg9: memref<1x1x8x64xf32, #tpu.memory_space<vmem>>, %arg10: memref<1x1x8x64xf32, #tpu.memory_space<vmem>>, %arg11: memref<1x1x8x64xf32, #tpu.memory_space<vmem>>, %arg12: memref<8x128xf32, #tpu.memory_space<vmem>>) attributes {dimension_semantics = [#tpu.dimension_semantics<parallel>, #tpu.dimension_semantics<parallel>, #tpu.dimension_semantics<arbitrary>], iteration_bounds = array<i64: 2, 1, 1>, scalar_prefetch = 0 : i64, scratch_operands = 1 : i64, tpu.core_type = #tpu.core_type<tc>, window_params = [{transform_indices = @transform_0, window_bounds = array<i64: 1, 8, 128>}, {pipeline_mode = #tpu.pipeline_mode<synchronous>, transform_indices = @transform_1, window_bounds = array<i64: 1, 128>}, {pipeline_mode = #tpu.pipeline_mode<synchronous>, transform_indices = @transform_2, window_bounds = array<i64: 1, 128>}, {transform_indices = @transform_3, window_bounds = array<i64: 1, 128, 64>}, {transform_indices = @transform_4, window_bounds = array<i64: 1, 128, 64>}, {transform_indices = @transform_5, window_bounds = array<i64: 1, 128, 64>}, {transform_indices = @transform_6, window_bounds = array<i64: 1, 1, 8, 64>}, {transform_indices = @transform_7, window_bounds = array<i64: 1, 1, 8, 64>}, {transform_indices = @transform_8, window_bounds = array<i64: 1, 1, 8, 64>}]} {
    %c0_i32 = arith.constant 0 : i32
    %0 = arith.cmpi eq, %arg2, %c0_i32 : i32
    %1 = arith.extui %0 : i1 to i32
    %c0_i32_0 = arith.constant 0 : i32
    %2 = arith.cmpi ne, %1, %c0_i32_0 : i32
    scf.if %2 {
      %c0_26 = arith.constant 0 : index
      %c0_27 = arith.constant 0 : index
      %c0_28 = arith.constant 0 : index
      %24 = vector.load %arg3[%c0_26, %c0_27, %c0_28] : memref<1x8x128xf32, #tpu.memory_space<vmem>>, vector<1x8x128xf32>
      %25 = vector.shape_cast %24 : vector<1x8x128xf32> to vector<8x128xf32>
      %cst_29 = arith.constant dense<0.000000e+00> : vector<8xf32>
      %26 = vector.multi_reduction <add>, %25, %cst_29 [1] : vector<8x128xf32> to vector<8xf32>
      %27 = vector.shape_cast %26 : vector<8xf32> to vector<8x1xf32>
      %28 = arith.mulf %25, %25 : vector<8x128xf32>
      %cst_30 = arith.constant dense<0.000000e+00> : vector<8xf32>
      %29 = vector.multi_reduction <add>, %28, %cst_30 [1] : vector<8x128xf32> to vector<8xf32>
      %30 = vector.shape_cast %29 : vector<8xf32> to vector<8x1xf32>
      %cst_31 = arith.constant 3.125000e-02 : f32
      %31 = vector.broadcast %cst_31 : f32 to vector<8x1xf32>
      %32 = arith.mulf %27, %31 : vector<8x1xf32>
      %cst_32 = arith.constant 3.125000e-02 : f32
      %33 = vector.broadcast %cst_32 : f32 to vector<8x1xf32>
      %34 = arith.mulf %30, %33 : vector<8x1xf32>
      %35 = arith.mulf %32, %32 : vector<8x1xf32>
      %36 = arith.subf %34, %35 : vector<8x1xf32>
      %cst_33 = arith.constant 0.000000e+00 : f32
      %37 = vector.broadcast %cst_33 : f32 to vector<8x1xf32>
      %38 = arith.maximumf %36, %37 : vector<8x1xf32>
      %cst_34 = arith.constant 9.99999974E-6 : f32
      %39 = vector.broadcast %cst_34 : f32 to vector<8x1xf32>
      %40 = arith.addf %38, %39 : vector<8x1xf32>
      %41 = math.rsqrt %40 : vector<8x1xf32>
      %c0_35 = arith.constant 0 : index
      %c0_36 = arith.constant 0 : index
      %42 = vector.load %arg4[%c0_35, %c0_36] : memref<1x128xf32, #tpu.memory_space<vmem>>, vector<1x128xf32>
      %43 = vector.shape_cast %42 : vector<1x128xf32> to vector<128xf32>
      %c0_37 = arith.constant 0 : index
      %c0_38 = arith.constant 0 : index
      %44 = vector.load %arg5[%c0_37, %c0_38] : memref<1x128xf32, #tpu.memory_space<vmem>>, vector<1x128xf32>
      %45 = vector.shape_cast %44 : vector<1x128xf32> to vector<128xf32>
      %46 = vector.broadcast %32 : vector<8x1xf32> to vector<8x128xf32>
      %47 = arith.subf %25, %46 : vector<8x128xf32>
      %48 = vector.broadcast %41 : vector<8x1xf32> to vector<8x128xf32>
      %49 = arith.mulf %47, %48 : vector<8x128xf32>
      %50 = vector.shape_cast %43 : vector<128xf32> to vector<1x128xf32>
      %51 = vector.broadcast %50 : vector<1x128xf32> to vector<8x128xf32>
      %52 = arith.mulf %49, %51 : vector<8x128xf32>
      %53 = vector.shape_cast %45 : vector<128xf32> to vector<1x128xf32>
      %54 = vector.broadcast %53 : vector<1x128xf32> to vector<8x128xf32>
      %55 = arith.addf %52, %54 : vector<8x128xf32>
      %c0_39 = arith.constant 0 : index
      %c0_40 = arith.constant 0 : index
      %56 = vector.load %arg12[%c0_39, %c0_40] : memref<8x128xf32, #tpu.memory_space<vmem>>, vector<8x128xf32>
      tpu.vector_store %arg12[%c0_39, %c0_40], %55 {strides = array<i32>} : memref<8x128xf32, #tpu.memory_space<vmem>>, vector<8x128xf32>,
    } else {
    }
    %c0 = arith.constant 0 : index
    %c0_1 = arith.constant 0 : index
    %3 = vector.load %arg12[%c0, %c0_1] : memref<8x128xf32, #tpu.memory_space<vmem>>, vector<8x128xf32>
    %c0_2 = arith.constant 0 : index
    %c0_3 = arith.constant 0 : index
    %c0_4 = arith.constant 0 : index
    %4 = vector.load %arg6[%c0_2, %c0_3, %c0_4] : memref<1x128x64xf32, #tpu.memory_space<vmem>>, vector<1x128x64xf32>
    %5 = vector.shape_cast %4 : vector<1x128x64xf32> to vector<128x64xf32>
    %cst = arith.constant dense<0.000000e+00> : vector<8x64xf32>
    %6 = tpu.matmul %3, %5, %cst {dimension_numbers = #tpu.dot_dimension_numbers<[1], [0], [0], [1], [0, 0, 1, 1], [], []>} : vector<8x128xf32>, vector<128x64xf32>, vector<8x64xf32> -> vector<8x64xf32>
    %c0_5 = arith.constant 0 : index
    %c0_6 = arith.constant 0 : index
    %c0_7 = arith.constant 0 : index
    %7 = vector.load %arg7[%c0_5, %c0_6, %c0_7] : memref<1x128x64xf32, #tpu.memory_space<vmem>>, vector<1x128x64xf32>
    %8 = vector.shape_cast %7 : vector<1x128x64xf32> to vector<128x64xf32>
    %cst_8 = arith.constant dense<0.000000e+00> : vector<8x64xf32>
    %9 = tpu.matmul %3, %8, %cst_8 {dimension_numbers = #tpu.dot_dimension_numbers<[1], [0], [0], [1], [0, 0, 1, 1], [], []>} : vector<8x128xf32>, vector<128x64xf32>, vector<8x64xf32> -> vector<8x64xf32>
    %c0_9 = arith.constant 0 : index
    %c0_10 = arith.constant 0 : index
    %c0_11 = arith.constant 0 : index
    %10 = vector.load %arg8[%c0_9, %c0_10, %c0_11] : memref<1x128x64xf32, #tpu.memory_space<vmem>>, vector<1x128x64xf32>
    %11 = vector.shape_cast %10 : vector<1x128x64xf32> to vector<128x64xf32>
    %cst_12 = arith.constant dense<0.000000e+00> : vector<8x64xf32>
    %12 = tpu.matmul %3, %11, %cst_12 {dimension_numbers = #tpu.dot_dimension_numbers<[1], [0], [0], [1], [0, 0, 1, 1], [], []>} : vector<8x128xf32>, vector<128x64xf32>, vector<8x64xf32> -> vector<8x64xf32>
    %cst_13 = arith.constant 1.250000e-01 : f32
    %13 = vector.broadcast %cst_13 : f32 to vector<8x64xf32>
    %14 = arith.mulf %6, %13 : vector<8x64xf32>
    %c0_14 = arith.constant 0 : index
    %c0_15 = arith.constant 0 : index
    %c0_16 = arith.constant 0 : index
    %c0_17 = arith.constant 0 : index
    %15 = vector.load %arg9[%c0_14, %c0_15, %c0_16, %c0_17] : memref<1x1x8x64xf32, #tpu.memory_space<vmem>>, vector<1x1x8x64xf32>
    %16 = vector.shape_cast %15 : vector<1x1x8x64xf32> to vector<8x64xf32>
    %17 = vector.shape_cast %14 : vector<8x64xf32> to vector<1x1x8x64xf32>
    tpu.vector_store %arg9[%c0_14, %c0_15, %c0_16, %c0_17], %17 {strides = array<i32>} : memref<1x1x8x64xf32, #tpu.memory_space<vmem>>, vector<1x1x8x64xf32>,
    %c0_18 = arith.constant 0 : index
    %c0_19 = arith.constant 0 : index
    %c0_20 = arith.constant 0 : index
    %c0_21 = arith.constant 0 : index
    %18 = vector.load %arg10[%c0_18, %c0_19, %c0_20, %c0_21] : memref<1x1x8x64xf32, #tpu.memory_space<vmem>>, vector<1x1x8x64xf32>
    %19 = vector.shape_cast %18 : vector<1x1x8x64xf32> to vector<8x64xf32>
    %20 = vector.shape_cast %9 : vector<8x64xf32> to vector<1x1x8x64xf32>
    tpu.vector_store %arg10[%c0_18, %c0_19, %c0_20, %c0_21], %20 {strides = array<i32>} : memref<1x1x8x64xf32, #tpu.memory_space<vmem>>, vector<1x1x8x64xf32>,
    %c0_22 = arith.constant 0 : index
    %c0_23 = arith.constant 0 : index
    %c0_24 = arith.constant 0 : index
    %c0_25 = arith.constant 0 : index
    %21 = vector.load %arg11[%c0_22, %c0_23, %c0_24, %c0_25] : memref<1x1x8x64xf32, #tpu.memory_space<vmem>>, vector<1x1x8x64xf32>
    %22 = vector.shape_cast %21 : vector<1x1x8x64xf32> to vector<8x64xf32>
    %23 = vector.shape_cast %12 : vector<8x64xf32> to vector<1x1x8x64xf32>
    tpu.vector_store %arg11[%c0_22, %c0_23, %c0_24, %c0_25], %23 {strides = array<i32>} : memref<1x1x8x64xf32, #tpu.memory_space<vmem>>, vector<1x1x8x64xf32>,
    return
  }
  func.func @transform_0(%arg0: i32, %arg1: i32, %arg2: i32) -> (i32, i32, i32) {
    %c0_i32 = arith.constant 0 : i32
    %c0_i32_0 = arith.constant 0 : i32
    return %arg0, %arg1, %c0_i32 : i32, i32, i32
  }
  func.func @transform_1(%arg0: i32, %arg1: i32, %arg2: i32) -> (i32, i32) {
    %c0_i32 = arith.constant 0 : i32
    %c0_i32_0 = arith.constant 0 : i32
    %c0_i32_1 = arith.constant 0 : i32
    return %c0_i32, %c0_i32_0 : i32, i32
  }
  func.func @transform_2(%arg0: i32, %arg1: i32, %arg2: i32) -> (i32, i32) {
    %c0_i32 = arith.constant 0 : i32
    %c0_i32_0 = arith.constant 0 : i32
    %c0_i32_1 = arith.constant 0 : i32
    return %c0_i32, %c0_i32_0 : i32, i32
  }
  func.func @transform_3(%arg0: i32, %arg1: i32, %arg2: i32) -> (i32, i32, i32) {
    %c0_i32 = arith.constant 0 : i32
    %c0_i32_0 = arith.constant 0 : i32
    %c0_i32_1 = arith.constant 0 : i32
    return %arg2, %c0_i32, %c0_i32_0 : i32, i32, i32
  }
  func.func @transform_4(%arg0: i32, %arg1: i32, %arg2: i32) -> (i32, i32, i32) {
    %c0_i32 = arith.constant 0 : i32
    %c0_i32_0 = arith.constant 0 : i32
    %c0_i32_1 = arith.constant 0 : i32
    return %arg2, %c0_i32, %c0_i32_0 : i32, i32, i32
  }
  func.func @transform_5(%arg0: i32, %arg1: i32, %arg2: i32) -> (i32, i32, i32) {
    %c0_i32 = arith.constant 0 : i32
    %c0_i32_0 = arith.constant 0 : i32
    %c0_i32_1 = arith.constant 0 : i32
    return %arg2, %c0_i32, %c0_i32_0 : i32, i32, i32
  }
  func.func @transform_6(%arg0: i32, %arg1: i32, %arg2: i32) -> (i32, i32, i32, i32) {
    %c0_i32 = arith.constant 0 : i32
    %c0_i32_0 = arith.constant 0 : i32
    return %arg0, %arg2, %arg1, %c0_i32 : i32, i32, i32, i32
  }
  func.func @transform_7(%arg0: i32, %arg1: i32, %arg2: i32) -> (i32, i32, i32, i32) {
    %c0_i32 = arith.constant 0 : i32
    %c0_i32_0 = arith.constant 0 : i32
    return %arg0, %arg2, %arg1, %c0_i32 : i32, i32, i32, i32
  }
  func.func @transform_8(%arg0: i32, %arg1: i32, %arg2: i32) -> (i32, i32, i32, i32) {
    %c0_i32 = arith.constant 0 : i32
    %c0_i32_0 = arith.constant 0 : i32
    return %arg0, %arg2, %arg1, %c0_i32 : i32, i32, i32, i32
  }
}

</mosaic_0001>

<llo_original>
// kernel: tpu_custom_call.1
$region0: #{tpu_custom_call.1}
  #allocation0 [shape = 'u32[]', space=smem, size = 0x4, offset = 0x4, fixed_abs, tag = 'smem constant byte address 0x4 - core index']
  #allocation1 [shape = 'u32[144,128]{1,0:T(1,128)}', space=vmem, size = 0x12000, scoped, tag = 'internal scratch']
  #allocation2 [shape = 'f32[8,128]{1,0:T(8,128)}', space=vmem, size = 0x1000, scoped, tag = 'scratch operand']
  %s0 = inlined_call_operand.vmem [shape: f32[2,8,128], index: 0, kind: input, shape index: {}]
  %s1 = inlined_call_operand.vmem [shape: f32[1,128], index: 1, kind: input, shape index: {}]
  %s2 = inlined_call_operand.vmem [shape: f32[1,128], index: 2, kind: input, shape index: {}]
  %s3 = inlined_call_operand.vmem [shape: f32[1,128,64], index: 3, kind: input, shape index: {}]
  %s4 = inlined_call_operand.vmem [shape: f32[1,128,64], index: 4, kind: input, shape index: {}]
  %s5 = inlined_call_operand.vmem [shape: f32[1,128,64], index: 5, kind: input, shape index: {}]
  %s6 = inlined_call_operand.hbm [shape: f32[2,1,8,64], index: 6, kind: output, shape index: {0}]
  %s7 = inlined_call_operand.hbm [shape: f32[2,1,8,64], index: 7, kind: output, shape index: {1}]
  %s8 = inlined_call_operand.hbm [shape: f32[2,1,8,64], index: 8, kind: output, shape index: {2}]
  %9 = xla_tuple %s6, %s7, %s8
  %s10 = sld [smem:[#allocation0]]
  $region77: #{tpu_custom_call.1} parent=0
    _
  %s12 = ssub.s32 1, %s10
  %s13 = scalar_select 0, %s12, %s10
  $region1: #{tpu_custom_call.1} parent=0
    #allocation3 [shape = 'u8[8192]{0}', space=vmem, size = 0x2000, scoped, tag = 'output window, operand 0']
    #allocation4 [shape = 's32[2]{0}', space=sflag, size = 0x8, scoped, tag = 'scoped memory for tpu_custom_call.1']
    #allocation5 [shape = 'u8[8192]{0}', space=vmem, size = 0x2000, scoped, tag = 'output window, operand 1']
    #allocation6 [shape = 's32[2]{0}', space=sflag, size = 0x8, scoped, tag = 'scoped memory for tpu_custom_call.1']
    #allocation7 [shape = 'u8[8192]{0}', space=vmem, size = 0x2000, scoped, tag = 'output window, operand 2']
    %14 = vsyncpa [#allocation4], 0
    %s15 = scalar_lea.sflag [#allocation4], 1
    %16 = vsyncpa %s15, 0
    %17 = vsyncpa [#allocation6], 0
    %s18 = scalar_lea.sflag [#allocation6], 1
    %19 = vsyncpa %s18, 0
    loop: start=0, step=1, limit=4
    $region2: #{tpu_custom_call.1} parent=1 // loop_pre_header
      _
    $region3: #{tpu_custom_call.1} parent=1 // loop_header
      %s21 = sphi 0, %s25
      %p22 = scmp.ge.s32.totalorder %s21, 4
      %s28 = sphi 0, %s47
      %s29 = sphi 0, %s43
      %s30 = sphi 0, %s39
      %s31 = sphi 0, %s28
      %s32 = sphi 0, %s29
      %s33 = sphi 0, %s30
      %s34 = sphi 0, %s31
      %s35 = sphi 0, %s32
      %s36 = sphi 0, %s33
      %s52 = sphi 0, %s54
      %s55 = sphi 0, %s52
      %s56 = sphi 0, %s55
      %s72 = sphi 0, %s56
      %s76 = sphi 0, %s76
      %s78 = sphi 0, %s76
      %s79 = sphi 0, %s78
      %s93 = sphi 0, %s79
      %s97 = sphi 0, %s97
      %s99 = sphi 0, %s97
      %s100 = sphi 0, %s99
      %s114 = sphi 0, %s100
      %s120 = sphi 0, %s122
      %s123 = sphi 0, %s120
      %s124 = sphi 0, %s123
      %s140 = sphi 0, %s124
      %s146 = sphi 0, %s148
      %s149 = sphi 0, %s146
      %s150 = sphi 0, %s149
      %s166 = sphi 0, %s150
      %s172 = sphi 0, %s174
      %s175 = sphi 0, %s172
      %s176 = sphi 0, %s175
      %s192 = sphi 0, %s176
      %s202 = sphi 0, %s204
      %s205 = sphi 0, %s202
      %s206 = sphi 0, %s205
      %s222 = sphi 0, %s206
      %s232 = sphi 0, %s234
      %s235 = sphi 0, %s232
      %s236 = sphi 0, %s235
      %s252 = sphi 0, %s236
      %s262 = sphi 0, %s264
      %s265 = sphi 0, %s262
      %s266 = sphi 0, %s265
      %s282 = sphi 0, %s266
    $region4: #{tpu_custom_call.1} parent=1 // loop_header_branch
      %24 = sbr.rel (%p22) target = $region8
    $region5: #{tpu_custom_call.1} parent=1 // loop_body
      %s26 = ssub.s32 %s21, 1
      %s27 = ssub.s32 %s21, 2
      %s37 = sadd.s32 1, %s30
      %p38 = scmp.ge.s32.totalorder %s37, 1
      %s39 = scalar_select %p38, 0, %s37
      %s40 = sadd.s32 1, %s29
      %s41 = scalar_select %p38, %s40, %s29
      %p42 = scmp.ge.s32.totalorder %s41, 1
      %s43 = scalar_select %p42, 0, %s41
      %s44 = sadd.s32 1, %s28
      %s45 = scalar_select %p42, %s44, %s28
      %p46 = scmp.ge.s32.totalorder %s45, 2
      %s47 = scalar_select %p46, 0, %s45
      %s48 = ssub.s32 %s28, %s47
      %s49 = ssub.s32 %s29, %s43
      %s50 = sor.u32 %s48, %s49
      %p51 = scmp.eq.s32.totalorder %s50, 0
      %s53 = sadd.s32 %s52, 1
      %s54 = scalar_select %p51, %s52, %s53
      %p57 = pneg %p51
      %p58 = scmp.eq.s32.totalorder %s21, 1
      %p59 = por %p57, %p58
      %p60 = scmp.ne.s32.totalorder %s52, %s55
      %p61 = scmp.eq.s32.totalorder %s21, 0
      %p62 = por %p60, %p61
      %p63 = scmp.ne.s32.totalorder %s52, %s55
      %p64 = scmp.eq.s32.totalorder %s26, 1
      %p65 = por %p63, %p64
      %p66 = scmp.ne.s32.totalorder %s55, %s56
      %p67 = scmp.eq.s32.totalorder %s26, 0
      %p68 = por %p66, %p67
      %p69 = scmp.ne.s32.totalorder %s55, %s56
      %p70 = scmp.eq.s32.totalorder %s27, 1
      %p71 = por %p69, %p70
      %p73 = scmp.ne.s32.totalorder %s56, %s72
      %p74 = scmp.eq.s32.totalorder %s27, 0
      %p75 = por %p73, %p74
      %s77 = sadd.s32 %s76, 1
      %p80 = scmp.eq.s32.totalorder %s21, 1
      %p81 = scmp.ne.s32.totalorder %s76, %s78
      %p82 = scmp.eq.s32.totalorder %s21, 0
      %p83 = por %p81, %p82
      %p84 = scmp.ne.s32.totalorder %s76, %s78
      %p85 = scmp.eq.s32.totalorder %s26, 1
      %p86 = por %p84, %p85
      %p87 = scmp.ne.s32.totalorder %s78, %s79
      %p88 = scmp.eq.s32.totalorder %s26, 0
      %p89 = por %p87, %p88
      %p90 = scmp.ne.s32.totalorder %s78, %s79
      %p91 = scmp.eq.s32.totalorder %s27, 1
      %p92 = por %p90, %p91
      %p94 = scmp.ne.s32.totalorder %s79, %s93
      %p95 = scmp.eq.s32.totalorder %s27, 0
      %p96 = por %p94, %p95
      %s98 = sadd.s32 %s97, 1
      %p101 = scmp.eq.s32.totalorder %s21, 1
      %p102 = scmp.ne.s32.totalorder %s97, %s99
      %p103 = scmp.eq.s32.totalorder %s21, 0
      %p104 = por %p102, %p103
      %p105 = scmp.ne.s32.totalorder %s97, %s99
      %p106 = scmp.eq.s32.totalorder %s26, 1
      %p107 = por %p105, %p106
      %p108 = scmp.ne.s32.totalorder %s99, %s100
      %p109 = scmp.eq.s32.totalorder %s26, 0
      %p110 = por %p108, %p109
      %p111 = scmp.ne.s32.totalorder %s99, %s100
      %p112 = scmp.eq.s32.totalorder %s27, 1
      %p113 = por %p111, %p112
      %p115 = scmp.ne.s32.totalorder %s100, %s114
      %p116 = scmp.eq.s32.totalorder %s27, 0
      %p117 = por %p115, %p116
      %s118 = ssub.s32 %s30, %s39
      %p119 = scmp.eq.s32.totalorder %s118, 0
      %s121 = sadd.s32 %s120, 1
      %s122 = scalar_select %p119, %s120, %s121
      %p125 = pneg %p119
      %p126 = scmp.eq.s32.totalorder %s21, 1
      %p127 = por %p125, %p126
      %p128 = scmp.ne.s32.totalorder %s120, %s123
      %p129 = scmp.eq.s32.totalorder %s21, 0
      %p130 = por %p128, %p129
      %p131 = scmp.ne.s32.totalorder %s120, %s123
      %p132 = scmp.eq.s32.totalorder %s26, 1
      %p133 = por %p131, %p132
      %p134 = scmp.ne.s32.totalorder %s123, %s124
      %p135 = scmp.eq.s32.totalorder %s26, 0
      %p136 = por %p134, %p135
      %p137 = scmp.ne.s32.totalorder %s123, %s124
      %p138 = scmp.eq.s32.totalorder %s27, 1
      %p139 = por %p137, %p138
      %p141 = scmp.ne.s32.totalorder %s124, %s140
      %p142 = scmp.eq.s32.totalorder %s27, 0
      %p143 = por %p141, %p142
      %s144 = ssub.s32 %s30, %s39
      %p145 = scmp.eq.s32.totalorder %s144, 0
      %s147 = sadd.s32 %s146, 1
      %s148 = scalar_select %p145, %s146, %s147
      %p151 = pneg %p145
      %p152 = scmp.eq.s32.totalorder %s21, 1
      %p153 = por %p151, %p152
      %p154 = scmp.ne.s32.totalorder %s146, %s149
      %p155 = scmp.eq.s32.totalorder %s21, 0
      %p156 = por %p154, %p155
      %p157 = scmp.ne.s32.totalorder %s146, %s149
      %p158 = scmp.eq.s32.totalorder %s26, 1
      %p159 = por %p157, %p158
      %p160 = scmp.ne.s32.totalorder %s149, %s150
      %p161 = scmp.eq.s32.totalorder %s26, 0
      %p162 = por %p160, %p161
      %p163 = scmp.ne.s32.totalorder %s149, %s150
      %p164 = scmp.eq.s32.totalorder %s27, 1
      %p165 = por %p163, %p164
      %p167 = scmp.ne.s32.totalorder %s150, %s166
      %p168 = scmp.eq.s32.totalorder %s27, 0
      %p169 = por %p167, %p168
      %s170 = ssub.s32 %s30, %s39
      %p171 = scmp.eq.s32.totalorder %s170, 0
      %s173 = sadd.s32 %s172, 1
      %s174 = scalar_select %p171, %s172, %s173
      %p177 = pneg %p171
      %p178 = scmp.eq.s32.totalorder %s21, 1
      %p179 = por %p177, %p178
      %p180 = scmp.ne.s32.totalorder %s172, %s175
      %p181 = scmp.eq.s32.totalorder %s21, 0
      %p182 = por %p180, %p181
      %p183 = scmp.ne.s32.totalorder %s172, %s175
      %p184 = scmp.eq.s32.totalorder %s26, 1
      %p185 = por %p183, %p184
      %p186 = scmp.ne.s32.totalorder %s175, %s176
      %p187 = scmp.eq.s32.totalorder %s26, 0
      %p188 = por %p186, %p187
      %p189 = scmp.ne.s32.totalorder %s175, %s176
      %p190 = scmp.eq.s32.totalorder %s27, 1
      %p191 = por %p189, %p190
      %p193 = scmp.ne.s32.totalorder %s176, %s192
      %p194 = scmp.eq.s32.totalorder %s27, 0
      %p195 = por %p193, %p194
      %s196 = ssub.s32 %s28, %s47
      %s197 = ssub.s32 %s30, %s39
      %s198 = sor.u32 %s196, %s197
      %s199 = ssub.s32 %s29, %s43
      %s200 = sor.u32 %s198, %s199
      %p201 = scmp.eq.s32.totalorder %s200, 0
      %s203 = sadd.s32 %s202, 1
      %s204 = scalar_select %p201, %s202, %s203
      %p207 = pneg %p201
      %p208 = scmp.eq.s32.totalorder %s21, 1
      %p209 = por %p207, %p208
      %p210 = scmp.ne.s32.totalorder %s202, %s205
      %p211 = scmp.eq.s32.totalorder %s21, 0
      %p212 = por %p210, %p211
      %p213 = scmp.ne.s32.totalorder %s202, %s205
      %p214 = scmp.eq.s32.totalorder %s26, 1
      %p215 = por %p213, %p214
      %p216 = scmp.ne.s32.totalorder %s205, %s206
      %p217 = scmp.eq.s32.totalorder %s26, 0
      %p218 = por %p216, %p217
      %p219 = scmp.ne.s32.totalorder %s205, %s206
      %p220 = scmp.eq.s32.totalorder %s27, 1
      %p221 = por %p219, %p220
      %p223 = scmp.ne.s32.totalorder %s206, %s222
      %p224 = scmp.eq.s32.totalorder %s27, 0
      %p225 = por %p223, %p224
      %s226 = ssub.s32 %s28, %s47
      %s227 = ssub.s32 %s30, %s39
      %s228 = sor.u32 %s226, %s227
      %s229 = ssub.s32 %s29, %s43
      %s230 = sor.u32 %s228, %s229
      %p231 = scmp.eq.s32.totalorder %s230, 0
      %s233 = sadd.s32 %s232, 1
      %s234 = scalar_select %p231, %s232, %s233
      %p237 = pneg %p231
      %p238 = scmp.eq.s32.totalorder %s21, 1
      %p239 = por %p237, %p238
      %p240 = scmp.ne.s32.totalorder %s232, %s235
      %p241 = scmp.eq.s32.totalorder %s21, 0
      %p242 = por %p240, %p241
      %p243 = scmp.ne.s32.totalorder %s232, %s235
      %p244 = scmp.eq.s32.totalorder %s26, 1
      %p245 = por %p243, %p244
      %p246 = scmp.ne.s32.totalorder %s235, %s236
      %p247 = scmp.eq.s32.totalorder %s26, 0
      %p248 = por %p246, %p247
      %p249 = scmp.ne.s32.totalorder %s235, %s236
      %p250 = scmp.eq.s32.totalorder %s27, 1
      %p251 = por %p249, %p250
      %p253 = scmp.ne.s32.totalorder %s236, %s252
      %p254 = scmp.eq.s32.totalorder %s27, 0
      %p255 = por %p253, %p254
      %s256 = ssub.s32 %s28, %s47
      %s257 = ssub.s32 %s30, %s39
      %s258 = sor.u32 %s256, %s257
      %s259 = ssub.s32 %s29, %s43
      %s260 = sor.u32 %s258, %s259
      %p261 = scmp.eq.s32.totalorder %s260, 0
      %s263 = sadd.s32 %s262, 1
      %s264 = scalar_select %p261, %s262, %s263
      %p267 = pneg %p261
      %p268 = scmp.eq.s32.totalorder %s21, 1
      %p269 = por %p267, %p268
      %p270 = scmp.ne.s32.totalorder %s262, %s265
      %p271 = scmp.eq.s32.totalorder %s21, 0
      %p272 = por %p270, %p271
      %p273 = scmp.ne.s32.totalorder %s262, %s265
      %p274 = scmp.eq.s32.totalorder %s26, 1
      %p275 = por %p273, %p274
      %p276 = scmp.ne.s32.totalorder %s265, %s266
      %p277 = scmp.eq.s32.totalorder %s26, 0
      %p278 = por %p276, %p277
      %p279 = scmp.ne.s32.totalorder %s265, %s266
      %p280 = scmp.eq.s32.totalorder %s27, 1
      %p281 = por %p279, %p280
      %p283 = scmp.ne.s32.totalorder %s266, %s282
      %p284 = scmp.eq.s32.totalorder %s27, 0
      %p285 = por %p283, %p284
      %p286 = scmp.le.s32.totalorder 1, %s21
      %p287 = scmp.lt.s32.totalorder %s21, 3
      %p288 = pnand %p286, %p287
      %p289 = pneg %p288
      // Predicated region
      $region9: #{tpu_custom_call.1} parent=5 // pred_check
        _
      $region10: #{tpu_custom_call.1} parent=5 // pred_check_branch
        %291 = sbr.rel (%p288) target = $region12
      $region11: #{tpu_custom_call.1} parent=5 // pred_region
        %s292 = ssub.s32 %s21, 1
        // Predicated region
        $region13: #{tpu_custom_call.1} parent=11 // pred_check
          %p293 = pneg %p89
        $region14: #{tpu_custom_call.1} parent=11 // pred_check_branch
          %295 = sbr.rel (%p293) target = $region16
        $region15: #{tpu_custom_call.1} parent=11 // pred_region
          _
        $region16: #{tpu_custom_call.1} parent=11 // pred_fallthru
          _
        // Predicated region
        $region17: #{tpu_custom_call.1} parent=11 // pred_check
          %p296 = pneg %p110
        $region18: #{tpu_custom_call.1} parent=11 // pred_check_branch
          %298 = sbr.rel (%p296) target = $region20
        $region19: #{tpu_custom_call.1} parent=11 // pred_region
          _
        $region20: #{tpu_custom_call.1} parent=11 // pred_fallthru
          _
        // Predicated region
        $region21: #{tpu_custom_call.1} parent=11 // pred_check
          %p299 = pneg %p136
        $region22: #{tpu_custom_call.1} parent=11 // pred_check_branch
          %301 = sbr.rel (%p299) target = $region24
        $region23: #{tpu_custom_call.1} parent=11 // pred_region
          %p302 = scmp.lt.s32.totalorder %s33, 0
          %s303 = scalar_select %p302, %s33, 0
          %s304 = smul.addr %s303, 16
          %s305 = smul.addr %s304, 8
          %s306 = scalar_lea.vmem %s3, %s305
        $region24: #{tpu_custom_call.1} parent=11 // pred_fallthru
          _
        // Predicated region
        $region25: #{tpu_custom_call.1} parent=11 // pred_check
          %p307 = pneg %p162
        $region26: #{tpu_custom_call.1} parent=11 // pred_check_branch
          %309 = sbr.rel (%p307) target = $region28
        $region27: #{tpu_custom_call.1} parent=11 // pred_region
          %p310 = scmp.lt.s32.totalorder %s33, 0
          %s311 = scalar_select %p310, %s33, 0
          %s312 = smul.addr %s311, 16
          %s313 = smul.addr %s312, 8
          %s314 = scalar_lea.vmem %s4, %s313
        $region28: #{tpu_custom_call.1} parent=11 // pred_fallthru
          _
        // Predicated region
        $region29: #{tpu_custom_call.1} parent=11 // pred_check
          %p315 = pneg %p188
        $region30: #{tpu_custom_call.1} parent=11 // pred_check_branch
          %317 = sbr.rel (%p315) target = $region32
        $region31: #{tpu_custom_call.1} parent=11 // pred_region
          %p318 = scmp.lt.s32.totalorder %s33, 0
          %s319 = scalar_select %p318, %s33, 0
          %s320 = smul.addr %s319, 16
          %s321 = smul.addr %s320, 8
          %s322 = scalar_lea.vmem %s5, %s321
        $region32: #{tpu_custom_call.1} parent=11 // pred_fallthru
          _
      $region12: #{tpu_custom_call.1} parent=5 // pred_fallthru
        _
      %p323 = scmp.lt.s32.totalorder %s21, 2
      // Predicated region
      $region33: #{tpu_custom_call.1} parent=5 // pred_check
        %p324 = pneg %p323
      $region34: #{tpu_custom_call.1} parent=5 // pred_check_branch
        %326 = sbr.rel (%p324) target = $region36
      $region35: #{tpu_custom_call.1} parent=5 // pred_region
        // Predicated region
        $region37: #{tpu_custom_call.1} parent=35 // pred_check
          %p327 = pneg %p62
        $region38: #{tpu_custom_call.1} parent=35 // pred_check_branch
          %329 = sbr.rel (%p327) target = $region40
        $region39: #{tpu_custom_call.1} parent=35 // pred_region
          %p330 = scmp.lt.s32.totalorder %s28, 1
          %s331 = scalar_select %p330, %s28, 1
          %p332 = scmp.lt.s32.totalorder %s29, 0
          %s333 = scalar_select %p332, %s29, 0
          %s334 = sadd.s32 %s333, %s331
          %s335 = smul.addr %s334, 8
          %s336 = scalar_lea.vmem %s0, %s335
        $region40: #{tpu_custom_call.1} parent=35 // pred_fallthru
          _
      $region36: #{tpu_custom_call.1} parent=5 // pred_fallthru
        _
      %p337 = scmp.le.s32.totalorder 1, %s21
      %p338 = scmp.lt.s32.totalorder %s21, 3
      %p339 = pnand %p337, %p338
      %p340 = pneg %p339
      // Predicated region
      $region41: #{tpu_custom_call.1} parent=5 // pred_check
        _
      $region42: #{tpu_custom_call.1} parent=5 // pred_check_branch
        %342 = sbr.rel (%p339) target = $region44
      $region43: #{tpu_custom_call.1} parent=5 // pred_region
        %s343 = ssub.s32 %s21, 1
        %p344 = scmp.lt.s32.totalorder %s31, 1
        %s345 = scalar_select %p344, %s31, 1
        %p346 = scmp.lt.s32.totalorder %s32, 0
        %s347 = scalar_select %p346, %s32, 0
        %s348 = sadd.s32 %s347, %s345
        %s349 = smul.addr %s348, 8
        %s350 = scalar_lea.vmem %s0, %s349
        %p351 = pneg %p68
        %p352 = pneg %p65
        %p353 = pneg %p89
        %p354 = pneg %p86
        %p355 = pneg %p110
        %p356 = pneg %p107
        %p357 = scmp.lt.s32.totalorder %s33, 0
        %s358 = scalar_select %p357, %s33, 0
        %s359 = smul.addr %s358, 16
        %s360 = smul.addr %s359, 8
        %s361 = scalar_lea.vmem %s3, %s360
        %p362 = pneg %p136
        %p363 = pneg %p133
        %p364 = scmp.lt.s32.totalorder %s33, 0
        %s365 = scalar_select %p364, %s33, 0
        %s366 = smul.addr %s365, 16
        %s367 = smul.addr %s366, 8
        %s368 = scalar_lea.vmem %s4, %s367
        %p369 = pneg %p162
        %p370 = pneg %p159
        %p371 = scmp.lt.s32.totalorder %s33, 0
        %s372 = scalar_select %p371, %s33, 0
        %s373 = smul.addr %s372, 16
        %s374 = smul.addr %s373, 8
        %s375 = scalar_lea.vmem %s5, %s374
        %p376 = pneg %p188
        %p377 = pneg %p185
        %p378 = pneg %p218
        %p379 = pneg %p215
        %s380 = sand.u32 %s205, 1
        %s381 = scalar_lea.sflag [#allocation4], %s380
        %s382 = sand.u32 %s205, 1
        %s383 = smul.addr %s382, 8
        %s384 = scalar_lea.vmem [#allocation3], %s383
        %p385 = pneg %p248
        %p386 = pneg %p245
        %s387 = sand.u32 %s26, 1
        %s388 = scalar_lea.sflag [#allocation6], %s387
        %s389 = sand.u32 %s235, 1
        %s390 = smul.addr %s389, 8
        %s391 = scalar_lea.vmem [#allocation5], %s390
        %p392 = pneg %p278
        %p393 = pneg %p275
        %s394 = sand.u32 %s26, 1
        %s395 = scalar_lea.sflag [#allocation6], %s394
        %s396 = sand.u32 %s265, 1
        %s397 = smul.addr %s396, 8
        %s398 = scalar_lea.vmem [#allocation7], %s397
        %p399 = scmp.lt.s32.totalorder %s31, 1
        %s400 = scalar_select %p399, %s31, 1
        %p401 = scmp.lt.s32.totalorder %s32, 0
        %s402 = scalar_select %p401, %s32, 0
        %s403 = sadd.s32 %s402, %s400
        %s404 = smul.addr %s403, 8
        %s405 = scalar_lea.vmem %s0, %s404
        %p406 = scmp.lt.s32.totalorder %s33, 0
        %s407 = scalar_select %p406, %s33, 0
        %s408 = smul.addr %s407, 16
        %s409 = smul.addr %s408, 8
        %s410 = scalar_lea.vmem %s3, %s409
        %p411 = scmp.lt.s32.totalorder %s33, 0
        %s412 = scalar_select %p411, %s33, 0
        %s413 = smul.addr %s412, 16
        %s414 = smul.addr %s413, 8
        %s415 = scalar_lea.vmem %s4, %s414
        %p416 = scmp.lt.s32.totalorder %s33, 0
        %s417 = scalar_select %p416, %s33, 0
        %s418 = smul.addr %s417, 16
        %s419 = smul.addr %s418, 8
        %s420 = scalar_lea.vmem %s5, %s419
        %p421 = scmp.eq.s32.totalorder %s33, 0
        // Predicated region
        $region45: #{tpu_custom_call.1} parent=43 // pred_check
          %p422 = pneg %p421
        $region46: #{tpu_custom_call.1} parent=43 // pred_check_branch
          %424 = sbr.rel (%p422) target = $region48
        $region47: #{tpu_custom_call.1} parent=43 // pred_region
          %v425 = vld [vmem:[%s405] sm:$0xff]
          %426 = vadd.xlane.f32.xlu0 %v425
          %v427 = vpop.xlane.xlu0 %426
          %v428 = vmul.f32 %v425, %v425
          %429 = vadd.xlane.f32.xlu0 %v428
          %v430 = vpop.xlane.xlu0 %429
          %v431 = vmul.f32 %v427, 0.03125
          %v432 = vmul.f32 %v430, 0.03125
          %v433 = vmul.f32 %v431, %v431
          %v434 = vsub.f32 %v432, %v433
          %v435 = vmax.f32 %v434, 0.0
          %v436 = vadd.f32 %v435, 1e-05
          %v437 = vrsqrt.pop %v436
          %v438 = vld [vmem:[%s1] sm:$0x1]
          %v439 = vld [vmem:[%s2] sm:$0x1]
          %v440 = vsub.f32 %v425, %v431
          %v441 = vmul.f32 %v440, %v437
          %v443 = vlaneseq
          %v444 = vshrl.u32 %v443, 7
          %v445 = vsub.s32 0, %v444
          %v446 = vrot.slane %v438, %v445
          %v448 = vmul.f32 %v441, %v446
          %v450 = vlaneseq
          %v451 = vshrl.u32 %v450, 7
          %v452 = vsub.s32 0, %v451
          %v453 = vrot.slane %v439, %v452
          %v455 = vadd.f32 %v448, %v453
          %456 = vst [vmem:[#allocation2] sm:$0xff] %v455
        $region48: #{tpu_custom_call.1} parent=43 // pred_fallthru
          _
        %v457 = vld [vmem:[#allocation2] sm:$0xff]
        %v458 = vld [vmem:[%s410] sm:$0xff]
        %v459 = vld [vmem:[%s410 + $0x8] sm:$0xff]
        %v460 = vld [vmem:[%s410 + $0x10] sm:$0xff]
        %v461 = vld [vmem:[%s410 + $0x18] sm:$0xff]
        %v462 = vld [vmem:[%s410 + $0x20] sm:$0xff]
        %v463 = vld [vmem:[%s410 + $0x28] sm:$0xff]
        %v464 = vld [vmem:[%s410 + $0x30] sm:$0xff]
        %v465 = vld [vmem:[%s410 + $0x38] sm:$0xff]
        %v466 = vld [vmem:[%s410 + $0x40] sm:$0xff]
        %v467 = vld [vmem:[%s410 + $0x48] sm:$0xff]
        %v468 = vld [vmem:[%s410 + $0x50] sm:$0xff]
        %v469 = vld [vmem:[%s410 + $0x58] sm:$0xff]
        %v470 = vld [vmem:[%s410 + $0x60] sm:$0xff]
        %v471 = vld [vmem:[%s410 + $0x68] sm:$0xff]
        %v472 = vld [vmem:[%s410 + $0x70] sm:$0xff]
        %v473 = vld [vmem:[%s410 + $0x78] sm:$0xff]
        %474 = vmatprep.subr.mxu0 0.0
        %475 = vmatpush1.msra.mxu0 %v458
        %476 = vmatprep.subr.mxu0 0.0
        %477 = vmatpush1.msra.mxu0 %v459
        %478 = vmatprep.subr.mxu0 0.0
        %479 = vmatpush1.msra.mxu0 %v460
        %480 = vmatprep.subr.mxu0 0.0
        %481 = vmatpush1.msra.mxu0 %v461
        %482 = vmatprep.subr.mxu0 0.0
        %483 = vmatpush1.msra.mxu0 %v462
        %484 = vmatprep.subr.mxu0 0.0
        %485 = vmatpush1.msra.mxu0 %v463
        %486 = vmatprep.subr.mxu0 0.0
        %487 = vmatpush1.msra.mxu0 %v464
        %488 = vmatprep.subr.mxu0 0.0
        %489 = vmatpush1.msra.mxu0 %v465
        %490 = vmatprep.subr.mxu0 0.0
        %491 = vmatpush1.msra.mxu0 %v466
        %492 = vmatprep.subr.mxu0 0.0
        %493 = vmatpush1.msra.mxu0 %v467
        %494 = vmatprep.subr.mxu0 0.0
        %495 = vmatpush1.msra.mxu0 %v468
        %496 = vmatprep.subr.mxu0 0.0
        %497 = vmatpush1.msra.mxu0 %v469
        %498 = vmatprep.subr.mxu0 0.0
        %499 = vmatpush1.msra.mxu0 %v470
        %500 = vmatprep.subr.mxu0 0.0
        %501 = vmatpush1.msra.mxu0 %v471
        %502 = vmatprep.subr.mxu0 0.0
        %503 = vmatpush1.msra.mxu0 %v472
        %504 = vmatprep.subr.mxu0 0.0
        %505 = vmatpush1.msra.mxu0 %v473
        %506 = vmatprep.subr.mxu0 0.0
        %507 = vmatpush1.msra.mxu0 0.0
        %508 = vmatprep.subr.mxu0 0.0
        %509 = vmatpush1.msra.mxu0 0.0
        %510 = vmatprep.subr.mxu0 0.0
        %511 = vmatpush1.msra.mxu0 0.0
        %512 = vmatprep.subr.mxu0 0.0
        %513 = vmatpush1.msra.mxu0 0.0
        %514 = vmatprep.subr.mxu0 0.0
        %515 = vmatpush1.msra.mxu0 0.0
        %516 = vmatprep.subr.mxu0 0.0
        %517 = vmatpush1.msra.mxu0 0.0
        %518 = vmatprep.subr.mxu0 0.0
        %519 = vmatpush1.msra.mxu0 0.0
        %520 = vmatprep.subr.mxu0 0.0
        %521 = vmatpush1.msra.mxu0 0.0
        %522 = vmatprep.subr.mxu0 0.0
        %523 = vmatpush1.msra.mxu0 0.0
        %524 = vmatprep.subr.mxu0 0.0
        %525 = vmatpush1.msra.mxu0 0.0
        %526 = vmatprep.subr.mxu0 0.0
        %527 = vmatpush1.msra.mxu0 0.0
        %528 = vmatprep.subr.mxu0 0.0
        %529 = vmatpush1.msra.mxu0 0.0
        %530 = vmatprep.subr.mxu0 0.0
        %531 = vmatpush1.msra.mxu0 0.0
        %532 = vmatprep.subr.mxu0 0.0
        %533 = vmatpush1.msra.mxu0 0.0
        %534 = vmatprep.subr.mxu0 0.0
        %535 = vmatpush1.msra.mxu0 0.0
        %536 = vmatprep.subr.mxu0 0.0
        %537 = vmatpush1.msra.mxu0 0.0
        %538 = vmatprep.mubr.f32.mxu0 0.0
        %539 = vmatmul.mubr.f32.gmra.mrb[0].mxu0 %v457
        %v540 = vpop.f32.mrb[0].mxu0
        %v541 = vadd.f32 0.0, %v540
        %v542 = vpop.f32.mrb[0].mxu0
        %543 = vdwg.mxu0
        %v544 = vld [vmem:[%s415] sm:$0xff]
        %v545 = vld [vmem:[%s415 + $0x8] sm:$0xff]
        %v546 = vld [vmem:[%s415 + $0x10] sm:$0xff]
        %v547 = vld [vmem:[%s415 + $0x18] sm:$0xff]
        %v548 = vld [vmem:[%s415 + $0x20] sm:$0xff]
        %v549 = vld [vmem:[%s415 + $0x28] sm:$0xff]
        %v550 = vld [vmem:[%s415 + $0x30] sm:$0xff]
        %v551 = vld [vmem:[%s415 + $0x38] sm:$0xff]
        %v552 = vld [vmem:[%s415 + $0x40] sm:$0xff]
        %v553 = vld [vmem:[%s415 + $0x48] sm:$0xff]
        %v554 = vld [vmem:[%s415 + $0x50] sm:$0xff]
        %v555 = vld [vmem:[%s415 + $0x58] sm:$0xff]
        %v556 = vld [vmem:[%s415 + $0x60] sm:$0xff]
        %v557 = vld [vmem:[%s415 + $0x68] sm:$0xff]
        %v558 = vld [vmem:[%s415 + $0x70] sm:$0xff]
        %v559 = vld [vmem:[%s415 + $0x78] sm:$0xff]
        %560 = vmatprep.subr.mxu0 0.0
        %561 = vmatpush1.msra.mxu0 %v544
        %562 = vmatprep.subr.mxu0 0.0
        %563 = vmatpush1.msra.mxu0 %v545
        %564 = vmatprep.subr.mxu0 0.0
        %565 = vmatpush1.msra.mxu0 %v546
        %566 = vmatprep.subr.mxu0 0.0
        %567 = vmatpush1.msra.mxu0 %v547
        %568 = vmatprep.subr.mxu0 0.0
        %569 = vmatpush1.msra.mxu0 %v548
        %570 = vmatprep.subr.mxu0 0.0
        %571 = vmatpush1.msra.mxu0 %v549
        %572 = vmatprep.subr.mxu0 0.0
        %573 = vmatpush1.msra.mxu0 %v550
        %574 = vmatprep.subr.mxu0 0.0
        %575 = vmatpush1.msra.mxu0 %v551
        %576 = vmatprep.subr.mxu0 0.0
        %577 = vmatpush1.msra.mxu0 %v552
        %578 = vmatprep.subr.mxu0 0.0
        %579 = vmatpush1.msra.mxu0 %v553
        %580 = vmatprep.subr.mxu0 0.0
        %581 = vmatpush1.msra.mxu0 %v554
        %582 = vmatprep.subr.mxu0 0.0
        %583 = vmatpush1.msra.mxu0 %v555
        %584 = vmatprep.subr.mxu0 0.0
        %585 = vmatpush1.msra.mxu0 %v556
        %586 = vmatprep.subr.mxu0 0.0
        %587 = vmatpush1.msra.mxu0 %v557
        %588 = vmatprep.subr.mxu0 0.0
        %589 = vmatpush1.msra.mxu0 %v558
        %590 = vmatprep.subr.mxu0 0.0
        %591 = vmatpush1.msra.mxu0 %v559
        %592 = vmatprep.subr.mxu0 0.0
        %593 = vmatpush1.msra.mxu0 0.0
        %594 = vmatprep.subr.mxu0 0.0
        %595 = vmatpush1.msra.mxu0 0.0
        %596 = vmatprep.subr.mxu0 0.0
        %597 = vmatpush1.msra.mxu0 0.0
        %598 = vmatprep.subr.mxu0 0.0
        %599 = vmatpush1.msra.mxu0 0.0
        %600 = vmatprep.subr.mxu0 0.0
        %601 = vmatpush1.msra.mxu0 0.0
        %602 = vmatprep.subr.mxu0 0.0
        %603 = vmatpush1.msra.mxu0 0.0
        %604 = vmatprep.subr.mxu0 0.0
        %605 = vmatpush1.msra.mxu0 0.0
        %606 = vmatprep.subr.mxu0 0.0
        %607 = vmatpush1.msra.mxu0 0.0
        %608 = vmatprep.subr.mxu0 0.0
        %609 = vmatpush1.msra.mxu0 0.0
        %610 = vmatprep.subr.mxu0 0.0
        %611 = vmatpush1.msra.mxu0 0.0
        %612 = vmatprep.subr.mxu0 0.0
        %613 = vmatpush1.msra.mxu0 0.0
        %614 = vmatprep.subr.mxu0 0.0
        %615 = vmatpush1.msra.mxu0 0.0
        %616 = vmatprep.subr.mxu0 0.0
        %617 = vmatpush1.msra.mxu0 0.0
        %618 = vmatprep.subr.mxu0 0.0
        %619 = vmatpush1.msra.mxu0 0.0
        %620 = vmatprep.subr.mxu0 0.0
        %621 = vmatpush1.msra.mxu0 0.0
        %622 = vmatprep.subr.mxu0 0.0
        %623 = vmatpush1.msra.mxu0 0.0
        %624 = vmatprep.mubr.f32.mxu0 0.0
        %625 = vmatmul.mubr.f32.gmra.mrb[0].mxu0 %v457
        %v626 = vpop.f32.mrb[0].mxu0
        %v627 = vadd.f32 0.0, %v626
        %v628 = vpop.f32.mrb[0].mxu0
        %629 = vdwg.mxu0
        %v630 = vld [vmem:[%s420] sm:$0xff]
        %v631 = vld [vmem:[%s420 + $0x8] sm:$0xff]
        %v632 = vld [vmem:[%s420 + $0x10] sm:$0xff]
        %v633 = vld [vmem:[%s420 + $0x18] sm:$0xff]
        %v634 = vld [vmem:[%s420 + $0x20] sm:$0xff]
        %v635 = vld [vmem:[%s420 + $0x28] sm:$0xff]
        %v636 = vld [vmem:[%s420 + $0x30] sm:$0xff]
        %v637 = vld [vmem:[%s420 + $0x38] sm:$0xff]
        %v638 = vld [vmem:[%s420 + $0x40] sm:$0xff]
        %v639 = vld [vmem:[%s420 + $0x48] sm:$0xff]
        %v640 = vld [vmem:[%s420 + $0x50] sm:$0xff]
        %v641 = vld [vmem:[%s420 + $0x58] sm:$0xff]
        %v642 = vld [vmem:[%s420 + $0x60] sm:$0xff]
        %v643 = vld [vmem:[%s420 + $0x68] sm:$0xff]
        %v644 = vld [vmem:[%s420 + $0x70] sm:$0xff]
        %v645 = vld [vmem:[%s420 + $0x78] sm:$0xff]
        %646 = vmatprep.subr.mxu0 0.0
        %647 = vmatpush1.msra.mxu0 %v630
        %648 = vmatprep.subr.mxu0 0.0
        %649 = vmatpush1.msra.mxu0 %v631
        %650 = vmatprep.subr.mxu0 0.0
        %651 = vmatpush1.msra.mxu0 %v632
        %652 = vmatprep.subr.mxu0 0.0
        %653 = vmatpush1.msra.mxu0 %v633
        %654 = vmatprep.subr.mxu0 0.0
        %655 = vmatpush1.msra.mxu0 %v634
        %656 = vmatprep.subr.mxu0 0.0
        %657 = vmatpush1.msra.mxu0 %v635
        %658 = vmatprep.subr.mxu0 0.0
        %659 = vmatpush1.msra.mxu0 %v636
        %660 = vmatprep.subr.mxu0 0.0
        %661 = vmatpush1.msra.mxu0 %v637
        %662 = vmatprep.subr.mxu0 0.0
        %663 = vmatpush1.msra.mxu0 %v638
        %664 = vmatprep.subr.mxu0 0.0
        %665 = vmatpush1.msra.mxu0 %v639
        %666 = vmatprep.subr.mxu0 0.0
        %667 = vmatpush1.msra.mxu0 %v640
        %668 = vmatprep.subr.mxu0 0.0
        %669 = vmatpush1.msra.mxu0 %v641
        %670 = vmatprep.subr.mxu0 0.0
        %671 = vmatpush1.msra.mxu0 %v642
        %672 = vmatprep.subr.mxu0 0.0
        %673 = vmatpush1.msra.mxu0 %v643
        %674 = vmatprep.subr.mxu0 0.0
        %675 = vmatpush1.msra.mxu0 %v644
        %676 = vmatprep.subr.mxu0 0.0
        %677 = vmatpush1.msra.mxu0 %v645
        %678 = vmatprep.subr.mxu0 0.0
        %679 = vmatpush1.msra.mxu0 0.0
        %680 = vmatprep.subr.mxu0 0.0
        %681 = vmatpush1.msra.mxu0 0.0
        %682 = vmatprep.subr.mxu0 0.0
        %683 = vmatpush1.msra.mxu0 0.0
        %684 = vmatprep.subr.mxu0 0.0
        %685 = vmatpush1.msra.mxu0 0.0
        %686 = vmatprep.subr.mxu0 0.0
        %687 = vmatpush1.msra.mxu0 0.0
        %688 = vmatprep.subr.mxu0 0.0
        %689 = vmatpush1.msra.mxu0 0.0
        %690 = vmatprep.subr.mxu0 0.0
        %691 = vmatpush1.msra.mxu0 0.0
        %692 = vmatprep.subr.mxu0 0.0
        %693 = vmatpush1.msra.mxu0 0.0
        %694 = vmatprep.subr.mxu0 0.0
        %695 = vmatpush1.msra.mxu0 0.0
        %696 = vmatprep.subr.mxu0 0.0
        %697 = vmatpush1.msra.mxu0 0.0
        %698 = vmatprep.subr.mxu0 0.0
        %699 = vmatpush1.msra.mxu0 0.0
        %700 = vmatprep.subr.mxu0 0.0
        %701 = vmatpush1.msra.mxu0 0.0
        %702 = vmatprep.subr.mxu0 0.0
        %703 = vmatpush1.msra.mxu0 0.0
        %704 = vmatprep.subr.mxu0 0.0
        %705 = vmatpush1.msra.mxu0 0.0
        %706 = vmatprep.subr.mxu0 0.0
        %707 = vmatpush1.msra.mxu0 0.0
        %708 = vmatprep.subr.mxu0 0.0
        %709 = vmatpush1.msra.mxu0 0.0
        %710 = vmatprep.mubr.f32.mxu0 0.0
        %711 = vmatmul.mubr.f32.gmra.mrb[0].mxu0 %v457
        %v712 = vpop.f32.mrb[0].mxu0
        %v713 = vadd.f32 0.0, %v712
        %v714 = vpop.f32.mrb[0].mxu0
        %715 = vdwg.mxu0
        %v716 = vmul.f32 %v541, 0.125
        %vm717 = vcmask 523264
        %718 = vst.msk [vmem:[%s384] sm:$0xff] %vm717, %v716
        %719 = vst.msk [vmem:[%s391] sm:$0xff] %vm717, %v627
        %720 = vst.msk [vmem:[%s398] sm:$0xff] %vm717, %v713
        %s721 = sand.u32 %s205, 1
        %s722 = scalar_lea.sflag [#allocation4], %s721
        %s723 = sand.u32 %s205, 1
        %s724 = smul.addr %s723, 8
        %s725 = scalar_lea.vmem [#allocation3], %s724
        %s726 = sand.u32 %s26, 1
        %s727 = scalar_lea.sflag [#allocation6], %s726
        %s728 = sand.u32 %s235, 1
        %s729 = smul.addr %s728, 8
        %s730 = scalar_lea.vmem [#allocation5], %s729
        %s731 = sand.u32 %s26, 1
        %s732 = scalar_lea.sflag [#allocation6], %s731
        %s733 = sand.u32 %s265, 1
        %s734 = smul.addr %s733, 8
        %s735 = scalar_lea.vmem [#allocation7], %s734
        // Predicated region
        $region49: #{tpu_custom_call.1} parent=43 // pred_check
          %p736 = pneg %p215
        $region50: #{tpu_custom_call.1} parent=43 // pred_check_branch
          %738 = sbr.rel (%p736) target = $region52
        $region51: #{tpu_custom_call.1} parent=43 // pred_region
          %s740 = ssub.s32 128, 128
          %741 = vsyncadd %s722, %s740
          %s742 = sadd.s32 %s32, %s33
          %s743 = sadd.s32 %s742, %s31
          %s744 = smul.addr %s743, 128
          %s745 = scalar_lea.hbm %s6, %s744
          %s747 = sshll.u32 %s725, 4
          %s748 = int_to_ptr.vmem [resolvable:$true] %s747
          %750 = dma.vmem_to_hbm [thread:$0]  %s748, 128, %s745, %s722
        $region52: #{tpu_custom_call.1} parent=43 // pred_fallthru
          _
        // Predicated region
        $region53: #{tpu_custom_call.1} parent=43 // pred_check
          %p751 = pneg %p245
        $region54: #{tpu_custom_call.1} parent=43 // pred_check_branch
          %753 = sbr.rel (%p751) target = $region56
        $region55: #{tpu_custom_call.1} parent=43 // pred_region
          %s755 = ssub.s32 128, 128
          %756 = vsyncadd %s727, %s755
          %s757 = sadd.s32 %s32, %s33
          %s758 = sadd.s32 %s757, %s31
          %s759 = smul.addr %s758, 128
          %s760 = scalar_lea.hbm %s7, %s759
          %s762 = sshll.u32 %s730, 4
          %s763 = int_to_ptr.vmem [resolvable:$true] %s762
          %765 = dma.vmem_to_hbm [thread:$0]  %s763, 128, %s760, %s727
        $region56: #{tpu_custom_call.1} parent=43 // pred_fallthru
          _
        // Predicated region
        $region57: #{tpu_custom_call.1} parent=43 // pred_check
          %p766 = pneg %p275
        $region58: #{tpu_custom_call.1} parent=43 // pred_check_branch
          %768 = sbr.rel (%p766) target = $region60
        $region59: #{tpu_custom_call.1} parent=43 // pred_region
          %s770 = ssub.s32 128, 128
          %771 = vsyncadd %s732, %s770
          %s772 = sadd.s32 %s32, %s33
          %s773 = sadd.s32 %s772, %s31
          %s774 = smul.addr %s773, 128
          %s775 = scalar_lea.hbm %s8, %s774
          %s777 = sshll.u32 %s735, 4
          %s778 = int_to_ptr.vmem [resolvable:$true] %s777
          %780 = dma.vmem_to_hbm [thread:$0]  %s778, 128, %s775, %s732
        $region60: #{tpu_custom_call.1} parent=43 // pred_fallthru
          _
      $region44: #{tpu_custom_call.1} parent=5 // pred_fallthru
        _
      %p781 = scmp.le.s32.totalorder 2, %s21
      // Predicated region
      $region61: #{tpu_custom_call.1} parent=5 // pred_check
        %p782 = pneg %p781
      $region62: #{tpu_custom_call.1} parent=5 // pred_check_branch
        %784 = sbr.rel (%p782) target = $region64
      $region63: #{tpu_custom_call.1} parent=5 // pred_region
        %s785 = ssub.s32 %s21, 2
        // Predicated region
        $region65: #{tpu_custom_call.1} parent=63 // pred_check
          %p786 = pneg %p221
        $region66: #{tpu_custom_call.1} parent=63 // pred_check_branch
          %788 = sbr.rel (%p786) target = $region68
        $region67: #{tpu_custom_call.1} parent=63 // pred_region
          %s789 = sand.u32 %s206, 1
          %s790 = scalar_lea.sflag [#allocation4], %s789
          %s791 = sand.u32 %s206, 1
          %s792 = smul.addr %s791, 8
          %s793 = scalar_lea.vmem [#allocation3], %s792
          %794 = dma.done %s790, 128
        $region68: #{tpu_custom_call.1} parent=63 // pred_fallthru
          _
        // Predicated region
        $region69: #{tpu_custom_call.1} parent=63 // pred_check
          %p795 = pneg %p251
        $region70: #{tpu_custom_call.1} parent=63 // pred_check_branch
          %797 = sbr.rel (%p795) target = $region72
        $region71: #{tpu_custom_call.1} parent=63 // pred_region
          %s798 = sand.u32 %s27, 1
          %s799 = scalar_lea.sflag [#allocation6], %s798
          %s800 = sand.u32 %s236, 1
          %s801 = smul.addr %s800, 8
          %s802 = scalar_lea.vmem [#allocation5], %s801
          %803 = dma.done %s799, 128
        $region72: #{tpu_custom_call.1} parent=63 // pred_fallthru
          _
        // Predicated region
        $region73: #{tpu_custom_call.1} parent=63 // pred_check
          %p804 = pneg %p281
        $region74: #{tpu_custom_call.1} parent=63 // pred_check_branch
          %806 = sbr.rel (%p804) target = $region76
        $region75: #{tpu_custom_call.1} parent=63 // pred_region
          %s807 = sand.u32 %s27, 1
          %s808 = scalar_lea.sflag [#allocation6], %s807
          %s809 = sand.u32 %s266, 1
          %s810 = smul.addr %s809, 8
          %s811 = scalar_lea.vmem [#allocation7], %s810
          %812 = dma.done %s808, 128
        $region76: #{tpu_custom_call.1} parent=63 // pred_fallthru
          _
      $region64: #{tpu_custom_call.1} parent=5 // pred_fallthru
        _
    $region6: #{tpu_custom_call.1} parent=1 // loop_footer
      %s25 = sadd.s32 1, %s21
    $region7: #{tpu_custom_call.1} parent=1 // loop_footer_branch
      %20 = sbr.rel target = $region3
    $region8: #{tpu_custom_call.1} parent=1 // loop_exit
      _
    %813 = vsyncpa [#allocation4], 1
    %s814 = scalar_lea.sflag [#allocation4], 1
    %815 = vsyncpa %s814, 1
    %816 = vsyncpa [#allocation6], 1
    %s817 = scalar_lea.sflag [#allocation6], 1
    %818 = vsyncpa %s817, 1

</llo_original>
